<compile_context>
chip_gen: v7x
topology: tpu7x:2x2x1
jax: 0.10.0
libtpu: 0.0.40
codegen_flags: <defaults>
</compile_context>

<pallas_src>
import math

import jax
import jax.numpy as jnp
from jax.experimental import pallas as pl
from jax.experimental.pallas import tpu as pltpu


def _round_up(x, m):
    return ((x + m - 1) // m) * m


# ------------------------- fused projection + recurrence --------------------- #

def _make_rnn_kernel(tt, bp, hp, ndir, hoist_wh):
    """One grid step = (direction d, time block t).

    Refs:
      x_ref  : (tt*bp, kp)    matmul dtype  inputs for this time block (ones
                                            column carries the fused bias)
      wp_ref : (kp, hp)       matmul dtype  input->hidden weights, direction d
      wh_ref : (hp, hp)       matmul dtype  hidden->hidden weights, direction d
      o_ref  : (tt, bp, hp)   f32           hidden states (forward time order)
      u_ref  : (tt*bp, hp)    f32 scratch   staged block projection (VMEM only)
      h_ref  : (ndir, bp, hp) f32 scratch   carried hidden state per direction
    """

    def kernel(x_ref, wp_ref, wh_ref, o_ref, u_ref, h_ref):
        d = pl.program_id(0)

        @pl.when(pl.program_id(1) == 0)
        def _():
            h_ref[d] = jnp.zeros((bp, hp), jnp.float32)        # h_{-1} = 0

        # Block input projection: one big lane-dense matmul, independent of the
        # serial h-chain (fills MXU bubbles); U lives only in VMEM.
        u_ref[...] = jnp.dot(x_ref[...], wp_ref[...],
                             preferred_element_type=jnp.float32)

        if hoist_wh:
            wh = wh_ref[...]                       # small W_h: keep in vregs
            read_wh = lambda: wh
        else:
            read_wh = lambda: wh_ref[...]          # large W_h: avoid vreg spills

        def step(i, h):
            # Forward direction walks j = i; backward walks j = tt-1-i so its
            # outputs land directly in forward time order (reversal is pure
            # addressing, no data flips anywhere).
            if ndir == 1:
                j = i
            else:
                j = i * (1 - 2 * d) + d * (tt - 1)
            row = pl.multiple_of(j * bp, bp)
            pre = u_ref[pl.ds(row, bp), :] + jnp.dot(
                h.astype(wh_ref.dtype), read_wh(),
                preferred_element_type=jnp.float32)
            h_new = jnp.tanh(pre)                  # f32 add / tanh / state
            o_ref[j] = h_new
            return h_new                           # state stays in vregs

        # State is a register-carried fori carry; h_ref only at block edges.
        h_ref[d] = jax.lax.fori_loop(0, tt, step, h_ref[d], unroll=True)

    return kernel


# ------------------------------ RNN module ---------------------------------- #

def init_linear_params(key, in_size, out_size):
    """Matches Linear.__init__: uniform(-stdv, stdv), stdv = 1/sqrt(in_size)."""
    stdv = 1.0 / math.sqrt(in_size)
    kw, kb = jax.random.split(key)
    w = jax.random.uniform(kw, (in_size, out_size), jnp.float32, -stdv, stdv)
    b = jax.random.uniform(kb, (out_size,), jnp.float32, -stdv, stdv)
    return w, b


def init_rnn_params(key, in_size, out_size, bi_directional=False):
    keys = jax.random.split(key, 4)
    params = {
        "i2h": init_linear_params(keys[0], in_size, out_size),
        "h2h": init_linear_params(keys[1], out_size, out_size),
    }
    if bi_directional:
        params["i2h_back"] = init_linear_params(keys[2], in_size, out_size)
        params["h2h_back"] = init_linear_params(keys[3], out_size, out_size)
    return params


def rnn_forward(params, x, bi_directional=False, *, time_block=32,
                matmul_dtype=jnp.bfloat16):
    """Faithful port of RNN.forward.  x: (T, B, in_size) float32."""
    T, B, d_in = x.shape
    dirs = [(params["i2h"][0], params["i2h"][1],
             params["h2h"][0], params["h2h"][1])]
    if bi_directional:
        dirs.append((params["i2h_back"][0], params["i2h_back"][1],
                     params["h2h_back"][0], params["h2h_back"][1]))
    ndir = len(dirs)
    H = dirs[0][0].shape[1]

    mm_dtype = jnp.dtype(matmul_dtype)
    itm = mm_dtype.itemsize
    hp = _round_up(H, 128)                      # lane-dense -> unmasked stores
    sub = 16 if itm < 4 else 8                  # bf16 packs 16 rows per sublane tile
    bp = _round_up(B, sub)

    tt = max(1, min(time_block, T))             # timesteps per grid step
    n_tb = -(-T // tt)
    tt = -(-T // n_tb)                          # re-balance to minimize padding
    t_pad = n_tb * tt

    k_raw = d_in + 1                            # ones column carries (b_i + b_h)
    kp = k_raw if k_raw <= 128 else _round_up(k_raw, 128)   # lane-friendly K

    # Fold (b_i + b_h) into the projection weights via an appended ones column,
    # so zero-padded time/batch rows project to exactly 0 (the reverse-order
    # backward scan then starts from an exact zero state across time padding).
    x_aug = jnp.concatenate([x, jnp.ones((T, B, 1), x.dtype)], axis=-1)
    x_aug = jnp.pad(x_aug, ((0, t_pad - T), (0, bp - B), (0, kp - k_raw)))
    x_flat = x_aug.reshape(t_pad * bp, kp).astype(mm_dtype)

    wp_cols, wr_cols = [], []
    for (wi, bi, wh, bh) in dirs:
        w_aug = jnp.concatenate([wi, (bi + bh)[None, :]], axis=0)   # (d_in+1, H)
        wp_cols.append(jnp.pad(w_aug, ((0, kp - k_raw), (0, hp - H))))
        wr_cols.append(jnp.pad(wh, ((0, hp - H), (0, hp - H))))
    w_proj = jnp.concatenate(wp_cols, axis=1).astype(mm_dtype)      # (kp, ndir*hp)
    w_rec = jnp.concatenate(wr_cols, axis=1).astype(mm_dtype)       # (hp, ndir*hp)

    def _tb(d, t):
        # forward walks time blocks 0..n_tb-1; backward walks them in reverse.
        return t * (1 - d) + (n_tb - 1 - t) * d

    x_map = lambda d, t: (_tb(d, t), 0)
    o_map = lambda d, t: (_tb(d, t), 0, d)
    w_map = lambda d, t: (0, d)                 # loop-invariant per direction

    hoist_wh = hp * hp * itm <= 64 * 1024       # keep W_h in vregs only if small

    cost = pl.CostEstimate(
        flops=int(2 * ndir * t_pad * bp * (kp * hp + hp * hp)),
        transcendentals=int(ndir * t_pad * bp * hp),
        bytes_accessed=int(ndir * x_flat.size * itm
                           + (w_proj.size + w_rec.size) * itm
                           + t_pad * bp * ndir * hp * 4))

    # VMEM budget (double-buffered blocks + scratch); only raise the scoped
    # limit when the most conservative default (16 MiB on v5e) may not fit.
    vmem_need = (2 * tt * bp * kp * itm         # x blocks
                 + 2 * kp * hp * itm            # W_proj block
                 + 2 * hp * hp * itm            # W_rec block
                 + 2 * tt * bp * hp * 4         # out blocks
                 + tt * bp * hp * 4             # staged U scratch
                 + ndir * bp * hp * 4)          # carried h scratch
    cp_kwargs = dict(dimension_semantics=("parallel", "arbitrary"))
    if vmem_need > 12 * (1 << 20):
        cp_kwargs["vmem_limit_bytes"] = int(min(2 * vmem_need, 64 * (1 << 20)))

    h_all = pl.pallas_call(
        _make_rnn_kernel(tt, bp, hp, ndir, hoist_wh),
        out_shape=jax.ShapeDtypeStruct((t_pad, bp, ndir * hp), jnp.float32),
        grid_spec=pltpu.PrefetchScalarGridSpec(
            num_scalar_prefetch=0,
            grid=(ndir, n_tb),
            in_specs=[
                pl.BlockSpec((tt * bp, kp), x_map),     # x block (row-major time)
                pl.BlockSpec((kp, hp), w_map),          # W_i (+bias row), per dir
                pl.BlockSpec((hp, hp), w_map),          # W_h, per dir
            ],
            out_specs=pl.BlockSpec((tt, bp, hp), o_map),
            scratch_shapes=[
                pltpu.VMEM((tt * bp, hp), jnp.float32),   # staged U (never in HBM)
                pltpu.VMEM((ndir, bp, hp), jnp.float32),  # per-direction h carry
            ],
        ),
        compiler_params=pltpu.CompilerParams(**cp_kwargs),
        cost_estimate=cost,
    )(x_flat, w_proj, w_rec)

    h_fwd = h_all[:T, :B, :H]                           # [h_1, ..., h_T]
    if not bi_directional:
        return h_fwd                                    # torch.stack(h[1:], 0)

    g = h_all[:T, :B, hp:hp + H]                        # [g_0, ..., g_{T-1}]
    zeros = jnp.zeros((1, B, H), h_fwd.dtype)
    h_shift = jnp.concatenate([zeros, h_fwd[:-1]], axis=0)   # [0, h_1, .., h_{T-1}]
    g_shift = jnp.concatenate([g[1:], zeros], axis=0)        # [g_1, .., g_{T-1}, 0]
    return jnp.concatenate([h_shift, g_shift], axis=2)


# ---------------------------- pure-JAX reference ----------------------------- #

def rnn_reference(params, x, bi_directional=False):
    T, B, _ = x.shape
    wi, bi = params["i2h"]
    wh, bh = params["h2h"]
    H = wi.shape[1]

    def scan_dir(xs, w_in, b_in, w_hid, b_hid):
        def step(h, xt):
            h_new = jnp.tanh(xt @ w_in + b_in + h @ w_hid + b_hid)
            return h_new, h_new
        _, hs = jax.lax.scan(step, jnp.zeros((B, H), jnp.float32), xs)
        return hs

    hs = scan_dir(x, wi, bi, wh, bh)
    if not bi_directional:
        return hs
    wib, bib = params["i2h_back"]
    whb, bhb = params["h2h_back"]
    g = scan_dir(x[::-1], wib, bib, whb, bhb)[::-1]
    zeros = jnp.zeros((1, B, H), jnp.float32)
    h_fwd = jnp.concatenate([zeros, hs[:-1]], axis=0)
    h_bwd = jnp.concatenate([g[1:], zeros], axis=0)
    return jnp.concatenate([h_fwd, h_bwd], axis=2)


# ----------------------------------- main ------------------------------------ #

if __name__ == "__main__":
    key = jax.random.PRNGKey(0)
    k_x, k_p = jax.random.split(key)

    T, B, IN_SIZE, HIDDEN = 8, 4, 16, 32
    x = jax.random.normal(k_x, (T, B, IN_SIZE), jnp.float32)

    params = init_rnn_params(k_p, IN_SIZE, HIDDEN, bi_directional=False)
    params_bi = init_rnn_params(k_p, IN_SIZE, HIDDEN, bi_directional=True)

    # f32 matmuls: tight check against the pure-JAX reference.
    out = jax.block_until_ready(
        rnn_forward(params, x, bi_directional=False, matmul_dtype=jnp.float32))
    ref = rnn_reference(params, x, bi_directional=False)
    assert out.shape == (T, B, HIDDEN)
    assert jnp.allclose(out, ref, atol=1e-5, rtol=1e-5)

    out_bi = jax.block_until_ready(
        rnn_forward(params_bi, x, bi_directional=True, matmul_dtype=jnp.float32))
    ref_bi = rnn_reference(params_bi, x, bi_directional=True)
    assert out_bi.shape == (T, B, 2 * HIDDEN)
    assert jnp.allclose(out_bi, ref_bi, atol=1e-5, rtol=1e-5)

    # Default bf16 matmul operands (f32 accumulate / add / tanh / state):
    # relaxed tolerance per review.
    out_bf16 = jax.block_until_ready(rnn_forward(params_bi, x, bi_directional=True))
    assert out_bf16.shape == (T, B, 2 * HIDDEN)
    assert jnp.allclose(out_bf16, ref_bi, atol=5e-2, rtol=0.0), float(
        jnp.max(jnp.abs(out_bf16 - ref_bi)))

    print("KERNEL_OK")
</pallas_src>

<mosaic_0001>
module attributes {stable_mosaic.version = 11 : i64} {
  func.func @kernel(%arg0: i32, %arg1: i32, %arg2: memref<64x17xf32, #tpu.memory_space<vmem>>, %arg3: memref<17x128xf32, #tpu.memory_space<vmem>>, %arg4: memref<128x128xf32, #tpu.memory_space<vmem>>, %arg5: memref<8x8x128xf32, #tpu.memory_space<vmem>>, %arg6: memref<64x128xf32, #tpu.memory_space<vmem>>, %arg7: memref<1x8x128xf32, #tpu.memory_space<vmem>>) attributes {dimension_semantics = [#tpu.dimension_semantics<parallel>, #tpu.dimension_semantics<arbitrary>], iteration_bounds = array<i64: 1, 1>, scalar_prefetch = 0 : i64, scratch_operands = 2 : i64, tpu.core_type = #tpu.core_type<tc>, window_params = [{transform_indices = @transform_0, window_bounds = array<i64: 64, 17>}, {transform_indices = @transform_1, window_bounds = array<i64: 17, 128>}, {transform_indices = @transform_2, window_bounds = array<i64: 128, 128>}, {transform_indices = @transform_3, window_bounds = array<i64: 8, 8, 128>}]} {
    %c0_i32 = arith.constant 0 : i32
    %0 = arith.cmpi eq, %arg1, %c0_i32 : i32
    %1 = arith.extui %0 : i1 to i32
    %c0_i32_0 = arith.constant 0 : i32
    %2 = arith.cmpi ne, %1, %c0_i32_0 : i32
    scf.if %2 {
      %cst_53 = arith.constant 0.000000e+00 : f32
      %103 = vector.broadcast %cst_53 : f32 to vector<8x128xf32>
      %104 = arith.index_cast %arg0 : i32 to index
      %c0_54 = arith.constant 0 : index
      %c0_55 = arith.constant 0 : index
      %105 = vector.load %arg7[%104, %c0_54, %c0_55] : memref<1x8x128xf32, #tpu.memory_space<vmem>>, vector<1x8x128xf32>
      %106 = vector.shape_cast %105 : vector<1x8x128xf32> to vector<8x128xf32>
      %107 = vector.shape_cast %103 : vector<8x128xf32> to vector<1x8x128xf32>
      tpu.vector_store %arg7[%104, %c0_54, %c0_55], %107 {strides = array<i32>} : memref<1x8x128xf32, #tpu.memory_space<vmem>>, vector<1x8x128xf32>,
    } else {
    }
    %c0 = arith.constant 0 : index
    %c0_1 = arith.constant 0 : index
    %3 = vector.load %arg2[%c0, %c0_1] : memref<64x17xf32, #tpu.memory_space<vmem>>, vector<64x17xf32>
    %c0_2 = arith.constant 0 : index
    %c0_3 = arith.constant 0 : index
    %4 = vector.load %arg3[%c0_2, %c0_3] : memref<17x128xf32, #tpu.memory_space<vmem>>, vector<17x128xf32>
    %cst = arith.constant dense<0.000000e+00> : vector<64x128xf32>
    %5 = tpu.matmul %3, %4, %cst {dimension_numbers = #tpu.dot_dimension_numbers<[1], [0], [0], [1], [0, 0, 1, 1], [], []>} : vector<64x17xf32>, vector<17x128xf32>, vector<64x128xf32> -> vector<64x128xf32>
    %c0_4 = arith.constant 0 : index
    %c0_5 = arith.constant 0 : index
    %6 = vector.load %arg6[%c0_4, %c0_5] : memref<64x128xf32, #tpu.memory_space<vmem>>, vector<64x128xf32>
    tpu.vector_store %arg6[%c0_4, %c0_5], %5 {strides = array<i32>} : memref<64x128xf32, #tpu.memory_space<vmem>>, vector<64x128xf32>,
    %c0_6 = arith.constant 0 : index
    %c0_7 = arith.constant 0 : index
    %7 = vector.load %arg4[%c0_6, %c0_7] : memref<128x128xf32, #tpu.memory_space<vmem>>, vector<128x128xf32>
    %8 = arith.index_cast %arg0 : i32 to index
    %c0_8 = arith.constant 0 : index
    %c0_9 = arith.constant 0 : index
    %9 = vector.load %arg7[%8, %c0_8, %c0_9] : memref<1x8x128xf32, #tpu.memory_space<vmem>>, vector<1x8x128xf32>
    %10 = vector.shape_cast %9 : vector<1x8x128xf32> to vector<8x128xf32>
    %c0_i32_10 = arith.constant 0 : i32
    %c8_i32 = arith.constant 8 : i32
    %11 = arith.muli %c0_i32_10, %c8_i32 : i32
    %12 = tpu.assume_multiple %11, 8 : i32
    %13 = arith.index_cast %12 : i32 to index
    %c0_11 = arith.constant 0 : index
    %14 = vector.load %arg6[%13, %c0_11] : memref<64x128xf32, #tpu.memory_space<vmem>>, vector<8x128xf32>
    %cst_12 = arith.constant dense<0.000000e+00> : vector<8x128xf32>
    %15 = tpu.matmul %10, %7, %cst_12 {dimension_numbers = #tpu.dot_dimension_numbers<[1], [0], [0], [1], [0, 0, 1, 1], [], []>} : vector<8x128xf32>, vector<128x128xf32>, vector<8x128xf32> -> vector<8x128xf32>
    %16 = arith.addf %14, %15 : vector<8x128xf32>
    %17 = math.tanh %16 : vector<8x128xf32>
    %18 = arith.index_cast %c0_i32_10 : i32 to index
    %c0_13 = arith.constant 0 : index
    %c0_14 = arith.constant 0 : index
    %19 = vector.load %arg5[%18, %c0_13, %c0_14] : memref<8x8x128xf32, #tpu.memory_space<vmem>>, vector<1x8x128xf32>
    %20 = vector.shape_cast %19 : vector<1x8x128xf32> to vector<8x128xf32>
    %21 = vector.shape_cast %17 : vector<8x128xf32> to vector<1x8x128xf32>
    tpu.vector_store %arg5[%18, %c0_13, %c0_14], %21 {strides = array<i32>} : memref<8x8x128xf32, #tpu.memory_space<vmem>>, vector<1x8x128xf32>,
    %c1_i32 = arith.constant 1 : i32
    %c8_i32_15 = arith.constant 8 : i32
    %22 = arith.muli %c1_i32, %c8_i32_15 : i32
    %23 = tpu.assume_multiple %22, 8 : i32
    %24 = arith.index_cast %23 : i32 to index
    %c0_16 = arith.constant 0 : index
    %25 = vector.load %arg6[%24, %c0_16] : memref<64x128xf32, #tpu.memory_space<vmem>>, vector<8x128xf32>
    %cst_17 = arith.constant dense<0.000000e+00> : vector<8x128xf32>
    %26 = tpu.matmul %17, %7, %cst_17 {dimension_numbers = #tpu.dot_dimension_numbers<[1], [0], [0], [1], [0, 0, 1, 1], [], []>} : vector<8x128xf32>, vector<128x128xf32>, vector<8x128xf32> -> vector<8x128xf32>
    %27 = arith.addf %25, %26 : vector<8x128xf32>
    %28 = math.tanh %27 : vector<8x128xf32>
    %29 = arith.index_cast %c1_i32 : i32 to index
    %c0_18 = arith.constant 0 : index
    %c0_19 = arith.constant 0 : index
    %30 = vector.load %arg5[%29, %c0_18, %c0_19] : memref<8x8x128xf32, #tpu.memory_space<vmem>>, vector<1x8x128xf32>
    %31 = vector.shape_cast %30 : vector<1x8x128xf32> to vector<8x128xf32>
    %32 = vector.shape_cast %28 : vector<8x128xf32> to vector<1x8x128xf32>
    tpu.vector_store %arg5[%29, %c0_18, %c0_19], %32 {strides = array<i32>} : memref<8x8x128xf32, #tpu.memory_space<vmem>>, vector<1x8x128xf32>,
    %c2_i32 = arith.constant 2 : i32
    %c8_i32_20 = arith.constant 8 : i32
    %33 = arith.muli %c2_i32, %c8_i32_20 : i32
    %34 = tpu.assume_multiple %33, 8 : i32
    %35 = arith.index_cast %34 : i32 to index
    %c0_21 = arith.constant 0 : index
    %36 = vector.load %arg6[%35, %c0_21] : memref<64x128xf32, #tpu.memory_space<vmem>>, vector<8x128xf32>
    %cst_22 = arith.constant dense<0.000000e+00> : vector<8x128xf32>
    %37 = tpu.matmul %28, %7, %cst_22 {dimension_numbers = #tpu.dot_dimension_numbers<[1], [0], [0], [1], [0, 0, 1, 1], [], []>} : vector<8x128xf32>, vector<128x128xf32>, vector<8x128xf32> -> vector<8x128xf32>
    %38 = arith.addf %36, %37 : vector<8x128xf32>
    %39 = math.tanh %38 : vector<8x128xf32>
    %40 = arith.index_cast %c2_i32 : i32 to index
    %c0_23 = arith.constant 0 : index
    %c0_24 = arith.constant 0 : index
    %41 = vector.load %arg5[%40, %c0_23, %c0_24] : memref<8x8x128xf32, #tpu.memory_space<vmem>>, vector<1x8x128xf32>
    %42 = vector.shape_cast %41 : vector<1x8x128xf32> to vector<8x128xf32>
    %43 = vector.shape_cast %39 : vector<8x128xf32> to vector<1x8x128xf32>
    tpu.vector_store %arg5[%40, %c0_23, %c0_24], %43 {strides = array<i32>} : memref<8x8x128xf32, #tpu.memory_space<vmem>>, vector<1x8x128xf32>,
    %c3_i32 = arith.constant 3 : i32
    %c8_i32_25 = arith.constant 8 : i32
    %44 = arith.muli %c3_i32, %c8_i32_25 : i32
    %45 = tpu.assume_multiple %44, 8 : i32
    %46 = arith.index_cast %45 : i32 to index
    %c0_26 = arith.constant 0 : index
    %47 = vector.load %arg6[%46, %c0_26] : memref<64x128xf32, #tpu.memory_space<vmem>>, vector<8x128xf32>
    %cst_27 = arith.constant dense<0.000000e+00> : vector<8x128xf32>
    %48 = tpu.matmul %39, %7, %cst_27 {dimension_numbers = #tpu.dot_dimension_numbers<[1], [0], [0], [1], [0, 0, 1, 1], [], []>} : vector<8x128xf32>, vector<128x128xf32>, vector<8x128xf32> -> vector<8x128xf32>
    %49 = arith.addf %47, %48 : vector<8x128xf32>
    %50 = math.tanh %49 : vector<8x128xf32>
    %51 = arith.index_cast %c3_i32 : i32 to index
    %c0_28 = arith.constant 0 : index
    %c0_29 = arith.constant 0 : index
    %52 = vector.load %arg5[%51, %c0_28, %c0_29] : memref<8x8x128xf32, #tpu.memory_space<vmem>>, vector<1x8x128xf32>
    %53 = vector.shape_cast %52 : vector<1x8x128xf32> to vector<8x128xf32>
    %54 = vector.shape_cast %50 : vector<8x128xf32> to vector<1x8x128xf32>
    tpu.vector_store %arg5[%51, %c0_28, %c0_29], %54 {strides = array<i32>} : memref<8x8x128xf32, #tpu.memory_space<vmem>>, vector<1x8x128xf32>,
    %c4_i32 = arith.constant 4 : i32
    %c8_i32_30 = arith.constant 8 : i32
    %55 = arith.muli %c4_i32, %c8_i32_30 : i32
    %56 = tpu.assume_multiple %55, 8 : i32
    %57 = arith.index_cast %56 : i32 to index
    %c0_31 = arith.constant 0 : index
    %58 = vector.load %arg6[%57, %c0_31] : memref<64x128xf32, #tpu.memory_space<vmem>>, vector<8x128xf32>
    %cst_32 = arith.constant dense<0.000000e+00> : vector<8x128xf32>
    %59 = tpu.matmul %50, %7, %cst_32 {dimension_numbers = #tpu.dot_dimension_numbers<[1], [0], [0], [1], [0, 0, 1, 1], [], []>} : vector<8x128xf32>, vector<128x128xf32>, vector<8x128xf32> -> vector<8x128xf32>
    %60 = arith.addf %58, %59 : vector<8x128xf32>
    %61 = math.tanh %60 : vector<8x128xf32>
    %62 = arith.index_cast %c4_i32 : i32 to index
    %c0_33 = arith.constant 0 : index
    %c0_34 = arith.constant 0 : index
    %63 = vector.load %arg5[%62, %c0_33, %c0_34] : memref<8x8x128xf32, #tpu.memory_space<vmem>>, vector<1x8x128xf32>
    %64 = vector.shape_cast %63 : vector<1x8x128xf32> to vector<8x128xf32>
    %65 = vector.shape_cast %61 : vector<8x128xf32> to vector<1x8x128xf32>
    tpu.vector_store %arg5[%62, %c0_33, %c0_34], %65 {strides = array<i32>} : memref<8x8x128xf32, #tpu.memory_space<vmem>>, vector<1x8x128xf32>,
    %c5_i32 = arith.constant 5 : i32
    %c8_i32_35 = arith.constant 8 : i32
    %66 = arith.muli %c5_i32, %c8_i32_35 : i32
    %67 = tpu.assume_multiple %66, 8 : i32
    %68 = arith.index_cast %67 : i32 to index
    %c0_36 = arith.constant 0 : index
    %69 = vector.load %arg6[%68, %c0_36] : memref<64x128xf32, #tpu.memory_space<vmem>>, vector<8x128xf32>
    %cst_37 = arith.constant dense<0.000000e+00> : vector<8x128xf32>
    %70 = tpu.matmul %61, %7, %cst_37 {dimension_numbers = #tpu.dot_dimension_numbers<[1], [0], [0], [1], [0, 0, 1, 1], [], []>} : vector<8x128xf32>, vector<128x128xf32>, vector<8x128xf32> -> vector<8x128xf32>
    %71 = arith.addf %69, %70 : vector<8x128xf32>
    %72 = math.tanh %71 : vector<8x128xf32>
    %73 = arith.index_cast %c5_i32 : i32 to index
    %c0_38 = arith.constant 0 : index
    %c0_39 = arith.constant 0 : index
    %74 = vector.load %arg5[%73, %c0_38, %c0_39] : memref<8x8x128xf32, #tpu.memory_space<vmem>>, vector<1x8x128xf32>
    %75 = vector.shape_cast %74 : vector<1x8x128xf32> to vector<8x128xf32>
    %76 = vector.shape_cast %72 : vector<8x128xf32> to vector<1x8x128xf32>
    tpu.vector_store %arg5[%73, %c0_38, %c0_39], %76 {strides = array<i32>} : memref<8x8x128xf32, #tpu.memory_space<vmem>>, vector<1x8x128xf32>,
    %c6_i32 = arith.constant 6 : i32
    %c8_i32_40 = arith.constant 8 : i32
    %77 = arith.muli %c6_i32, %c8_i32_40 : i32
    %78 = tpu.assume_multiple %77, 8 : i32
    %79 = arith.index_cast %78 : i32 to index
    %c0_41 = arith.constant 0 : index
    %80 = vector.load %arg6[%79, %c0_41] : memref<64x128xf32, #tpu.memory_space<vmem>>, vector<8x128xf32>
    %cst_42 = arith.constant dense<0.000000e+00> : vector<8x128xf32>
    %81 = tpu.matmul %72, %7, %cst_42 {dimension_numbers = #tpu.dot_dimension_numbers<[1], [0], [0], [1], [0, 0, 1, 1], [], []>} : vector<8x128xf32>, vector<128x128xf32>, vector<8x128xf32> -> vector<8x128xf32>
    %82 = arith.addf %80, %81 : vector<8x128xf32>
    %83 = math.tanh %82 : vector<8x128xf32>
    %84 = arith.index_cast %c6_i32 : i32 to index
    %c0_43 = arith.constant 0 : index
    %c0_44 = arith.constant 0 : index
    %85 = vector.load %arg5[%84, %c0_43, %c0_44] : memref<8x8x128xf32, #tpu.memory_space<vmem>>, vector<1x8x128xf32>
    %86 = vector.shape_cast %85 : vector<1x8x128xf32> to vector<8x128xf32>
    %87 = vector.shape_cast %83 : vector<8x128xf32> to vector<1x8x128xf32>
    tpu.vector_store %arg5[%84, %c0_43, %c0_44], %87 {strides = array<i32>} : memref<8x8x128xf32, #tpu.memory_space<vmem>>, vector<1x8x128xf32>,
    %c7_i32 = arith.constant 7 : i32
    %c8_i32_45 = arith.constant 8 : i32
    %88 = arith.muli %c7_i32, %c8_i32_45 : i32
    %89 = tpu.assume_multiple %88, 8 : i32
    %90 = arith.index_cast %89 : i32 to index
    %c0_46 = arith.constant 0 : index
    %91 = vector.load %arg6[%90, %c0_46] : memref<64x128xf32, #tpu.memory_space<vmem>>, vector<8x128xf32>
    %cst_47 = arith.constant dense<0.000000e+00> : vector<8x128xf32>
    %92 = tpu.matmul %83, %7, %cst_47 {dimension_numbers = #tpu.dot_dimension_numbers<[1], [0], [0], [1], [0, 0, 1, 1], [], []>} : vector<8x128xf32>, vector<128x128xf32>, vector<8x128xf32> -> vector<8x128xf32>
    %93 = arith.addf %91, %92 : vector<8x128xf32>
    %94 = math.tanh %93 : vector<8x128xf32>
    %95 = arith.index_cast %c7_i32 : i32 to index
    %c0_48 = arith.constant 0 : index
    %c0_49 = arith.constant 0 : index
    %96 = vector.load %arg5[%95, %c0_48, %c0_49] : memref<8x8x128xf32, #tpu.memory_space<vmem>>, vector<1x8x128xf32>
    %97 = vector.shape_cast %96 : vector<1x8x128xf32> to vector<8x128xf32>
    %98 = vector.shape_cast %94 : vector<8x128xf32> to vector<1x8x128xf32>
    tpu.vector_store %arg5[%95, %c0_48, %c0_49], %98 {strides = array<i32>} : memref<8x8x128xf32, #tpu.memory_space<vmem>>, vector<1x8x128xf32>,
    %c8_i32_50 = arith.constant 8 : i32
    %99 = arith.index_cast %arg0 : i32 to index
    %c0_51 = arith.constant 0 : index
    %c0_52 = arith.constant 0 : index
    %100 = vector.load %arg7[%99, %c0_51, %c0_52] : memref<1x8x128xf32, #tpu.memory_space<vmem>>, vector<1x8x128xf32>
    %101 = vector.shape_cast %100 : vector<1x8x128xf32> to vector<8x128xf32>
    %102 = vector.shape_cast %94 : vector<8x128xf32> to vector<1x8x128xf32>
    tpu.vector_store %arg7[%99, %c0_51, %c0_52], %102 {strides = array<i32>} : memref<1x8x128xf32, #tpu.memory_space<vmem>>, vector<1x8x128xf32>,
    return
  }
  func.func @transform_0(%arg0: i32, %arg1: i32) -> (i32, i32) {
    %c1_i32 = arith.constant 1 : i32
    %0 = arith.subi %c1_i32, %arg0 : i32
    %1 = arith.muli %arg1, %0 : i32
    %c0_i32 = arith.constant 0 : i32
    %2 = arith.subi %c0_i32, %arg1 : i32
    %3 = arith.muli %2, %arg0 : i32
    %4 = arith.addi %1, %3 : i32
    %c0_i32_0 = arith.constant 0 : i32
    %c0_i32_1 = arith.constant 0 : i32
    return %4, %c0_i32_0 : i32, i32
  }
  func.func @transform_1(%arg0: i32, %arg1: i32) -> (i32, i32) {
    %c0_i32 = arith.constant 0 : i32
    %c0_i32_0 = arith.constant 0 : i32
    return %c0_i32, %arg0 : i32, i32
  }
  func.func @transform_2(%arg0: i32, %arg1: i32) -> (i32, i32) {
    %c0_i32 = arith.constant 0 : i32
    %c0_i32_0 = arith.constant 0 : i32
    return %c0_i32, %arg0 : i32, i32
  }
  func.func @transform_3(%arg0: i32, %arg1: i32) -> (i32, i32, i32) {
    %c1_i32 = arith.constant 1 : i32
    %0 = arith.subi %c1_i32, %arg0 : i32
    %1 = arith.muli %arg1, %0 : i32
    %c0_i32 = arith.constant 0 : i32
    %2 = arith.subi %c0_i32, %arg1 : i32
    %3 = arith.muli %2, %arg0 : i32
    %4 = arith.addi %1, %3 : i32
    %c0_i32_0 = arith.constant 0 : i32
    %c0_i32_1 = arith.constant 0 : i32
    return %4, %c0_i32_0, %arg0 : i32, i32, i32
  }
}

</mosaic_0001>

<llo_original>
// kernel: tpu_custom_call.1
$region0: #{tpu_custom_call.1}
  #allocation0 [shape = 'u32[]', space=smem, size = 0x4, offset = 0x4, fixed_abs, tag = 'smem constant byte address 0x4 - core index']
  #allocation1 [shape = 'u32[144,128]{1,0:T(1,128)}', space=vmem, size = 0x12000, scoped, tag = 'internal scratch']
  #allocation2 [shape = 'f32[64,128]{1,0:T(8,128)}', space=vmem, size = 0x8000, scoped, tag = 'scratch operand']
  #allocation3 [shape = 'f32[1,8,128]{2,1,0:T(8,128)}', space=vmem, size = 0x1000, scoped, tag = 'scratch operand']
  %s0 = inlined_call_operand.vmem [shape: f32[64,17], index: 0, kind: input, shape index: {}]
  %s1 = inlined_call_operand.vmem [shape: f32[17,128], index: 1, kind: input, shape index: {}]
  %s2 = inlined_call_operand.hbm [shape: f32[128,128], index: 2, kind: input, shape index: {}]
  %s3 = inlined_call_operand.hbm [shape: f32[8,8,128], index: 3, kind: output, shape index: {}]
  %s4 = sld [smem:[#allocation0]]
  $region30: #{tpu_custom_call.1} parent=0
    _
  %s6 = ssub.s32 1, %s4
  %s7 = scalar_select 0, %s6, %s4
  $region1: #{tpu_custom_call.1} parent=0
    #allocation4 [shape = 'u8[65536]{0}', space=vmem, size = 0x10000, scoped, tag = 'input window, operand 2, single buffered']
    #allocation5 [shape = 's32[1]{0}', space=sflag, size = 0x4, scoped, tag = 'scoped memory for tpu_custom_call.1']
    #allocation6 [shape = 's32[1]{0}', space=sflag, size = 0x4, scoped, tag = 'scoped memory for tpu_custom_call.1']
    #allocation7 [shape = 'u8[32768]{0}', space=vmem, size = 0x8000, scoped, tag = 'output window, operand 0, single buffered']
    %8 = vsyncpa [#allocation5], 0
    %9 = vsyncpa [#allocation6], 0
    // Predicated region
    $region2: #{tpu_custom_call.1} parent=1 // pred_check
      _
    $region3: #{tpu_custom_call.1} parent=1 // pred_check_branch
      %11 = sbr.rel (0) target = $region5
    $region4: #{tpu_custom_call.1} parent=1 // pred_region
      %s12 = ssub.s32 1, 0
      %s13 = smul.u32 0, %s12
      %s14 = ssub.s32 0, 0
      %s15 = smul.u32 %s14, 0
      %s16 = sadd.s32 %s13, %s15
      %s17 = smul.u32 8, %s16
      %p18 = scmp.lt.s32.totalorder %s17, 7
      %s19 = scalar_select %p18, %s17, 7
      %s20 = smul.addr %s19, 8
      %s21 = scalar_lea.vmem %s0, %s20
      %s22 = ssub.s32 1, 0
      %s23 = smul.u32 0, %s22
      %s24 = ssub.s32 0, 0
      %s25 = smul.u32 %s24, 0
      %s26 = sadd.s32 %s23, %s25
      %s27 = smul.u32 8, %s26
    $region5: #{tpu_custom_call.1} parent=1 // pred_fallthru
      _
    // Predicated region
    $region6: #{tpu_custom_call.1} parent=1 // pred_check
      _
    $region7: #{tpu_custom_call.1} parent=1 // pred_check_branch
      %29 = sbr.rel (0) target = $region9
    $region8: #{tpu_custom_call.1} parent=1 // pred_region
      _
    $region9: #{tpu_custom_call.1} parent=1 // pred_fallthru
      _
    // Predicated region
    $region10: #{tpu_custom_call.1} parent=1 // pred_check
      _
    $region11: #{tpu_custom_call.1} parent=1 // pred_check_branch
      %31 = sbr.rel (0) target = $region13
    $region12: #{tpu_custom_call.1} parent=1 // pred_region
      %s33 = ssub.s32 2048, 2048
      %34 = vsyncadd [#allocation5], %s33
      %s35 = sshll.u32 [#allocation4], 4
      %s36 = int_to_ptr.vmem [resolvable:$true] %s35
      %41 = dma.hbm_to_vmem [thread:$0]  %s2, 2048, %s36, [#allocation5], 128, 128, 8
    $region13: #{tpu_custom_call.1} parent=1 // pred_fallthru
      _
    // Predicated region
    $region14: #{tpu_custom_call.1} parent=1 // pred_check
      _
    $region15: #{tpu_custom_call.1} parent=1 // pred_check_branch
      %43 = sbr.rel (0) target = $region17
    $region16: #{tpu_custom_call.1} parent=1 // pred_region
      %44 = dma.done [#allocation5], 2048
    $region17: #{tpu_custom_call.1} parent=1 // pred_fallthru
      _
    %s45 = ssub.s32 1, 0
    %s46 = smul.u32 0, %s45
    %s47 = ssub.s32 0, 0
    %s48 = smul.u32 %s47, 0
    %s49 = sadd.s32 %s46, %s48
    %s50 = smul.u32 8, %s49
    %p51 = scmp.lt.s32.totalorder %s50, 7
    %s52 = scalar_select %p51, %s50, 7
    %s53 = smul.addr %s52, 8
    %s54 = scalar_lea.vmem %s0, %s53
    %s55 = ssub.s32 1, 0
    %s56 = smul.u32 0, %s55
    %s57 = ssub.s32 0, 0
    %s58 = smul.u32 %s57, 0
    %s59 = sadd.s32 %s56, %s58
    %s60 = smul.u32 8, %s59
    %p61 = scmp.lt.s32.totalorder %s60, 7
    %s62 = scalar_select %p61, %s60, 7
    %s63 = smul.addr %s62, 8
    %s64 = scalar_lea.vmem %s0, %s63
    %s65 = ssub.s32 1, 0
    %s66 = smul.u32 0, %s65
    %s67 = ssub.s32 0, 0
    %s68 = smul.u32 %s67, 0
    %s69 = sadd.s32 %s66, %s68
    %s70 = smul.u32 8, %s69
    %s71 = ssub.s32 1, 0
    %s72 = smul.u32 0, %s71
    %s73 = ssub.s32 0, 0
    %s74 = smul.u32 %s73, 0
    %s75 = sadd.s32 %s72, %s74
    %s76 = smul.u32 8, %s75
    %p77 = scmp.eq.s32.totalorder 0, 0
    // Predicated region
    $region18: #{tpu_custom_call.1} parent=1 // pred_check
      %p78 = pneg %p77
    $region19: #{tpu_custom_call.1} parent=1 // pred_check_branch
      %80 = sbr.rel (%p78) target = $region21
    $region20: #{tpu_custom_call.1} parent=1 // pred_region
      %s81 = smul.u32 0, 8
      %s82 = scalar_lea.vmem [#allocation3], %s81
      %83 = vst [vmem:[%s82] sm:$0xff] 0.0
    $region21: #{tpu_custom_call.1} parent=1 // pred_fallthru
      _
    %v84 = vld [vmem:[%s64] sm:$0xff]
    %v85 = vld [vmem:[%s64 + $0x8] sm:$0xff]
    %v86 = vld [vmem:[%s64 + $0x10] sm:$0xff]
    %v87 = vld [vmem:[%s64 + $0x18] sm:$0xff]
    %v88 = vld [vmem:[%s64 + $0x20] sm:$0xff]
    %v89 = vld [vmem:[%s64 + $0x28] sm:$0xff]
    %v90 = vld [vmem:[%s64 + $0x30] sm:$0xff]
    %v91 = vld [vmem:[%s64 + $0x38] sm:$0xff]
    %v92 = vld [vmem:[%s1] sm:$0xff]
    %v93 = vld [vmem:[%s1 + $0x8] sm:$0xff]
    %v94 = vld [vmem:[%s1 + $0x10] sm:$0x1]
    %vm95 = vcmask 138240
    %v97 = vsel %vm95, %v84, 0
    %v100 = vsel %vm95, %v85, 0
    %v103 = vsel %vm95, %v86, 0
    %v106 = vsel %vm95, %v87, 0
    %v109 = vsel %vm95, %v88, 0
    %v112 = vsel %vm95, %v89, 0
    %v115 = vsel %vm95, %v90, 0
    %v118 = vsel %vm95, %v91, 0
    %vm120 = vcmask 1040384
    %v122 = vsel %vm120, %v94, 0
    %124 = vmatprep.subr.mxu0 0.0
    %125 = vmatpush1.msra.mxu0 %v92
    %126 = vmatprep.subr.mxu0 0.0
    %127 = vmatpush1.msra.mxu0 %v93
    %128 = vmatprep.subr.mxu0 0.0
    %129 = vmatpush1.msra.mxu0 %v122
    %130 = vmatprep.subr.mxu0 0.0
    %131 = vmatpush1.msra.mxu0 0.0
    %132 = vmatprep.subr.mxu0 0.0
    %133 = vmatpush1.msra.mxu0 0.0
    %134 = vmatprep.subr.mxu0 0.0
    %135 = vmatpush1.msra.mxu0 0.0
    %136 = vmatprep.subr.mxu0 0.0
    %137 = vmatpush1.msra.mxu0 0.0
    %138 = vmatprep.subr.mxu0 0.0
    %139 = vmatpush1.msra.mxu0 0.0
    %140 = vmatprep.subr.mxu0 0.0
    %141 = vmatpush1.msra.mxu0 0.0
    %142 = vmatprep.subr.mxu0 0.0
    %143 = vmatpush1.msra.mxu0 0.0
    %144 = vmatprep.subr.mxu0 0.0
    %145 = vmatpush1.msra.mxu0 0.0
    %146 = vmatprep.subr.mxu0 0.0
    %147 = vmatpush1.msra.mxu0 0.0
    %148 = vmatprep.subr.mxu0 0.0
    %149 = vmatpush1.msra.mxu0 0.0
    %150 = vmatprep.subr.mxu0 0.0
    %151 = vmatpush1.msra.mxu0 0.0
    %152 = vmatprep.subr.mxu0 0.0
    %153 = vmatpush1.msra.mxu0 0.0
    %154 = vmatprep.subr.mxu0 0.0
    %155 = vmatpush1.msra.mxu0 0.0
    %156 = vmatprep.subr.mxu0 0.0
    %157 = vmatpush1.msra.mxu0 0.0
    %158 = vmatprep.subr.mxu0 0.0
    %159 = vmatpush1.msra.mxu0 0.0
    %160 = vmatprep.subr.mxu0 0.0
    %161 = vmatpush1.msra.mxu0 0.0
    %162 = vmatprep.subr.mxu0 0.0
    %163 = vmatpush1.msra.mxu0 0.0
    %164 = vmatprep.subr.mxu0 0.0
    %165 = vmatpush1.msra.mxu0 0.0
    %166 = vmatprep.subr.mxu0 0.0
    %167 = vmatpush1.msra.mxu0 0.0
    %168 = vmatprep.subr.mxu0 0.0
    %169 = vmatpush1.msra.mxu0 0.0
    %170 = vmatprep.subr.mxu0 0.0
    %171 = vmatpush1.msra.mxu0 0.0
    %172 = vmatprep.subr.mxu0 0.0
    %173 = vmatpush1.msra.mxu0 0.0
    %174 = vmatprep.subr.mxu0 0.0
    %175 = vmatpush1.msra.mxu0 0.0
    %176 = vmatprep.subr.mxu0 0.0
    %177 = vmatpush1.msra.mxu0 0.0
    %178 = vmatprep.subr.mxu0 0.0
    %179 = vmatpush1.msra.mxu0 0.0
    %180 = vmatprep.subr.mxu0 0.0
    %181 = vmatpush1.msra.mxu0 0.0
    %182 = vmatprep.subr.mxu0 0.0
    %183 = vmatpush1.msra.mxu0 0.0
    %184 = vmatprep.subr.mxu0 0.0
    %185 = vmatpush1.msra.mxu0 0.0
    %186 = vmatprep.subr.mxu0 0.0
    %187 = vmatpush1.msra.mxu0 0.0
    %188 = vmatprep.mubr.f32.mxu0 0.0
    %189 = vmatmul.mubr.f32.gmra.mrb[0].mxu0 %v97
    %v190 = vpop.f32.mrb[0].mxu0
    %v191 = vadd.f32 0.0, %v190
    %v192 = vpop.f32.mrb[0].mxu0
    %193 = vmatprep.mubr.f32.mxu0 0.0
    %194 = vmatmul.mubr.f32.gmra.mrb[0].mxu0 %v100
    %v195 = vpop.f32.mrb[0].mxu0
    %v196 = vadd.f32 0.0, %v195
    %v197 = vpop.f32.mrb[0].mxu0
    %198 = vmatprep.mubr.f32.mxu0 0.0
    %199 = vmatmul.mubr.f32.gmra.mrb[0].mxu0 %v103
    %v200 = vpop.f32.mrb[0].mxu0
    %v201 = vadd.f32 0.0, %v200
    %v202 = vpop.f32.mrb[0].mxu0
    %203 = vmatprep.mubr.f32.mxu0 0.0
    %204 = vmatmul.mubr.f32.gmra.mrb[0].mxu0 %v106
    %v205 = vpop.f32.mrb[0].mxu0
    %v206 = vadd.f32 0.0, %v205
    %v207 = vpop.f32.mrb[0].mxu0
    %208 = vmatprep.mubr.f32.mxu0 0.0
    %209 = vmatmul.mubr.f32.gmra.mrb[0].mxu0 %v109
    %v210 = vpop.f32.mrb[0].mxu0
    %v211 = vadd.f32 0.0, %v210
    %v212 = vpop.f32.mrb[0].mxu0
    %213 = vmatprep.mubr.f32.mxu0 0.0
    %214 = vmatmul.mubr.f32.gmra.mrb[0].mxu0 %v112
    %v215 = vpop.f32.mrb[0].mxu0
    %v216 = vadd.f32 0.0, %v215
    %v217 = vpop.f32.mrb[0].mxu0
    %218 = vmatprep.mubr.f32.mxu0 0.0
    %219 = vmatmul.mubr.f32.gmra.mrb[0].mxu0 %v115
    %v220 = vpop.f32.mrb[0].mxu0
    %v221 = vadd.f32 0.0, %v220
    %v222 = vpop.f32.mrb[0].mxu0
    %223 = vmatprep.mubr.f32.mxu0 0.0
    %224 = vmatmul.mubr.f32.gmra.mrb[0].mxu0 %v118
    %v225 = vpop.f32.mrb[0].mxu0
    %v226 = vadd.f32 0.0, %v225
    %v227 = vpop.f32.mrb[0].mxu0
    %228 = vdwg.mxu0
    %229 = vst [vmem:[#allocation2] sm:$0xff] %v191
    %230 = vst [vmem:[#allocation2 + $0x8] sm:$0xff] %v196
    %231 = vst [vmem:[#allocation2 + $0x10] sm:$0xff] %v201
    %232 = vst [vmem:[#allocation2 + $0x18] sm:$0xff] %v206
    %233 = vst [vmem:[#allocation2 + $0x20] sm:$0xff] %v211
    %234 = vst [vmem:[#allocation2 + $0x28] sm:$0xff] %v216
    %235 = vst [vmem:[#allocation2 + $0x30] sm:$0xff] %v221
    %236 = vst [vmem:[#allocation2 + $0x38] sm:$0xff] %v226
    %v237 = vld [vmem:[#allocation4] sm:$0xff]
    %v238 = vld [vmem:[#allocation4 + $0x8] sm:$0xff]
    %v239 = vld [vmem:[#allocation4 + $0x10] sm:$0xff]
    %v240 = vld [vmem:[#allocation4 + $0x18] sm:$0xff]
    %v241 = vld [vmem:[#allocation4 + $0x20] sm:$0xff]
    %v242 = vld [vmem:[#allocation4 + $0x28] sm:$0xff]
    %v243 = vld [vmem:[#allocation4 + $0x30] sm:$0xff]
    %v244 = vld [vmem:[#allocation4 + $0x38] sm:$0xff]
    %v245 = vld [vmem:[#allocation4 + $0x40] sm:$0xff]
    %v246 = vld [vmem:[#allocation4 + $0x48] sm:$0xff]
    %v247 = vld [vmem:[#allocation4 + $0x50] sm:$0xff]
    %v248 = vld [vmem:[#allocation4 + $0x58] sm:$0xff]
    %v249 = vld [vmem:[#allocation4 + $0x60] sm:$0xff]
    %v250 = vld [vmem:[#allocation4 + $0x68] sm:$0xff]
    %v251 = vld [vmem:[#allocation4 + $0x70] sm:$0xff]
    %v252 = vld [vmem:[#allocation4 + $0x78] sm:$0xff]
    %s253 = smul.u32 0, 8
    %s254 = scalar_lea.vmem [#allocation3], %s253
    %v255 = vld [vmem:[%s254] sm:$0xff]
    %v256 = vld [vmem:[#allocation2] sm:$0xff]
    %257 = vmatprep.subr.mxu0 0.0
    %258 = vmatpush1.msra.mxu0 %v237
    %259 = vmatprep.subr.mxu0 0.0
    %260 = vmatpush1.msra.mxu0 %v238
    %261 = vmatprep.subr.mxu0 0.0
    %262 = vmatpush1.msra.mxu0 %v239
    %263 = vmatprep.subr.mxu0 0.0
    %264 = vmatpush1.msra.mxu0 %v240
    %265 = vmatprep.subr.mxu0 0.0
    %266 = vmatpush1.msra.mxu0 %v241
    %267 = vmatprep.subr.mxu0 0.0
    %268 = vmatpush1.msra.mxu0 %v242
    %269 = vmatprep.subr.mxu0 0.0
    %270 = vmatpush1.msra.mxu0 %v243
    %271 = vmatprep.subr.mxu0 0.0
    %272 = vmatpush1.msra.mxu0 %v244
    %273 = vmatprep.subr.mxu0 0.0
    %274 = vmatpush1.msra.mxu0 %v245
    %275 = vmatprep.subr.mxu0 0.0
    %276 = vmatpush1.msra.mxu0 %v246
    %277 = vmatprep.subr.mxu0 0.0
    %278 = vmatpush1.msra.mxu0 %v247
    %279 = vmatprep.subr.mxu0 0.0
    %280 = vmatpush1.msra.mxu0 %v248
    %281 = vmatprep.subr.mxu0 0.0
    %282 = vmatpush1.msra.mxu0 %v249
    %283 = vmatprep.subr.mxu0 0.0
    %284 = vmatpush1.msra.mxu0 %v250
    %285 = vmatprep.subr.mxu0 0.0
    %286 = vmatpush1.msra.mxu0 %v251
    %287 = vmatprep.subr.mxu0 0.0
    %288 = vmatpush1.msra.mxu0 %v252
    %289 = vmatprep.subr.mxu0 0.0
    %290 = vmatpush1.msra.mxu0 0.0
    %291 = vmatprep.subr.mxu0 0.0
    %292 = vmatpush1.msra.mxu0 0.0
    %293 = vmatprep.subr.mxu0 0.0
    %294 = vmatpush1.msra.mxu0 0.0
    %295 = vmatprep.subr.mxu0 0.0
    %296 = vmatpush1.msra.mxu0 0.0
    %297 = vmatprep.subr.mxu0 0.0
    %298 = vmatpush1.msra.mxu0 0.0
    %299 = vmatprep.subr.mxu0 0.0
    %300 = vmatpush1.msra.mxu0 0.0
    %301 = vmatprep.subr.mxu0 0.0
    %302 = vmatpush1.msra.mxu0 0.0
    %303 = vmatprep.subr.mxu0 0.0
    %304 = vmatpush1.msra.mxu0 0.0
    %305 = vmatprep.subr.mxu0 0.0
    %306 = vmatpush1.msra.mxu0 0.0
    %307 = vmatprep.subr.mxu0 0.0
    %308 = vmatpush1.msra.mxu0 0.0
    %309 = vmatprep.subr.mxu0 0.0
    %310 = vmatpush1.msra.mxu0 0.0
    %311 = vmatprep.subr.mxu0 0.0
    %312 = vmatpush1.msra.mxu0 0.0
    %313 = vmatprep.subr.mxu0 0.0
    %314 = vmatpush1.msra.mxu0 0.0
    %315 = vmatprep.subr.mxu0 0.0
    %316 = vmatpush1.msra.mxu0 0.0
    %317 = vmatprep.subr.mxu0 0.0
    %318 = vmatpush1.msra.mxu0 0.0
    %319 = vmatprep.subr.mxu0 0.0
    %320 = vmatpush1.msra.mxu0 0.0
    %321 = vmatprep.mubr.f32.mxu0 0.0
    %322 = vmatmul.mubr.f32.gmra.mrb[0].mxu0 %v255
    %v323 = vpop.f32.mrb[0].mxu0
    %v324 = vadd.f32 0.0, %v323
    %v325 = vpop.f32.mrb[0].mxu0
    %326 = vdwg.mxu0
    %v327 = vadd.f32 %v256, %v324
    %v328 = vtanh.pop %v327
    %329 = vst [vmem:[#allocation7] sm:$0xff] %v328
    %s330 = scalar_lea.vmem [#allocation2], 8
    %v331 = vld [vmem:[%s330] sm:$0xff]
    %332 = vmatprep.subr.mxu0 0.0
    %333 = vmatpush1.msra.mxu0 %v237
    %334 = vmatprep.subr.mxu0 0.0
    %335 = vmatpush1.msra.mxu0 %v238
    %336 = vmatprep.subr.mxu0 0.0
    %337 = vmatpush1.msra.mxu0 %v239
    %338 = vmatprep.subr.mxu0 0.0
    %339 = vmatpush1.msra.mxu0 %v240
    %340 = vmatprep.subr.mxu0 0.0
    %341 = vmatpush1.msra.mxu0 %v241
    %342 = vmatprep.subr.mxu0 0.0
    %343 = vmatpush1.msra.mxu0 %v242
    %344 = vmatprep.subr.mxu0 0.0
    %345 = vmatpush1.msra.mxu0 %v243
    %346 = vmatprep.subr.mxu0 0.0
    %347 = vmatpush1.msra.mxu0 %v244
    %348 = vmatprep.subr.mxu0 0.0
    %349 = vmatpush1.msra.mxu0 %v245
    %350 = vmatprep.subr.mxu0 0.0
    %351 = vmatpush1.msra.mxu0 %v246
    %352 = vmatprep.subr.mxu0 0.0
    %353 = vmatpush1.msra.mxu0 %v247
    %354 = vmatprep.subr.mxu0 0.0
    %355 = vmatpush1.msra.mxu0 %v248
    %356 = vmatprep.subr.mxu0 0.0
    %357 = vmatpush1.msra.mxu0 %v249
    %358 = vmatprep.subr.mxu0 0.0
    %359 = vmatpush1.msra.mxu0 %v250
    %360 = vmatprep.subr.mxu0 0.0
    %361 = vmatpush1.msra.mxu0 %v251
    %362 = vmatprep.subr.mxu0 0.0
    %363 = vmatpush1.msra.mxu0 %v252
    %364 = vmatprep.subr.mxu0 0.0
    %365 = vmatpush1.msra.mxu0 0.0
    %366 = vmatprep.subr.mxu0 0.0
    %367 = vmatpush1.msra.mxu0 0.0
    %368 = vmatprep.subr.mxu0 0.0
    %369 = vmatpush1.msra.mxu0 0.0
    %370 = vmatprep.subr.mxu0 0.0
    %371 = vmatpush1.msra.mxu0 0.0
    %372 = vmatprep.subr.mxu0 0.0
    %373 = vmatpush1.msra.mxu0 0.0
    %374 = vmatprep.subr.mxu0 0.0
    %375 = vmatpush1.msra.mxu0 0.0
    %376 = vmatprep.subr.mxu0 0.0
    %377 = vmatpush1.msra.mxu0 0.0
    %378 = vmatprep.subr.mxu0 0.0
    %379 = vmatpush1.msra.mxu0 0.0
    %380 = vmatprep.subr.mxu0 0.0
    %381 = vmatpush1.msra.mxu0 0.0
    %382 = vmatprep.subr.mxu0 0.0
    %383 = vmatpush1.msra.mxu0 0.0
    %384 = vmatprep.subr.mxu0 0.0
    %385 = vmatpush1.msra.mxu0 0.0
    %386 = vmatprep.subr.mxu0 0.0
    %387 = vmatpush1.msra.mxu0 0.0
    %388 = vmatprep.subr.mxu0 0.0
    %389 = vmatpush1.msra.mxu0 0.0
    %390 = vmatprep.subr.mxu0 0.0
    %391 = vmatpush1.msra.mxu0 0.0
    %392 = vmatprep.subr.mxu0 0.0
    %393 = vmatpush1.msra.mxu0 0.0
    %394 = vmatprep.subr.mxu0 0.0
    %395 = vmatpush1.msra.mxu0 0.0
    %396 = vmatprep.mubr.f32.mxu0 0.0
    %397 = vmatmul.mubr.f32.gmra.mrb[0].mxu0 %v328
    %v398 = vpop.f32.mrb[0].mxu0
    %v399 = vadd.f32 0.0, %v398
    %v400 = vpop.f32.mrb[0].mxu0
    %401 = vdwg.mxu0
    %v402 = vadd.f32 %v331, %v399
    %v403 = vtanh.pop %v402
    %s404 = scalar_lea.vmem [#allocation7], 8
    %405 = vst [vmem:[%s404] sm:$0xff] %v403
    %s406 = scalar_lea.vmem [#allocation2], 16
    %v407 = vld [vmem:[%s406] sm:$0xff]
    %408 = vmatprep.subr.mxu0 0.0
    %409 = vmatpush1.msra.mxu0 %v237
    %410 = vmatprep.subr.mxu0 0.0
    %411 = vmatpush1.msra.mxu0 %v238
    %412 = vmatprep.subr.mxu0 0.0
    %413 = vmatpush1.msra.mxu0 %v239
    %414 = vmatprep.subr.mxu0 0.0
    %415 = vmatpush1.msra.mxu0 %v240
    %416 = vmatprep.subr.mxu0 0.0
    %417 = vmatpush1.msra.mxu0 %v241
    %418 = vmatprep.subr.mxu0 0.0
    %419 = vmatpush1.msra.mxu0 %v242
    %420 = vmatprep.subr.mxu0 0.0
    %421 = vmatpush1.msra.mxu0 %v243
    %422 = vmatprep.subr.mxu0 0.0
    %423 = vmatpush1.msra.mxu0 %v244
    %424 = vmatprep.subr.mxu0 0.0
    %425 = vmatpush1.msra.mxu0 %v245
    %426 = vmatprep.subr.mxu0 0.0
    %427 = vmatpush1.msra.mxu0 %v246
    %428 = vmatprep.subr.mxu0 0.0
    %429 = vmatpush1.msra.mxu0 %v247
    %430 = vmatprep.subr.mxu0 0.0
    %431 = vmatpush1.msra.mxu0 %v248
    %432 = vmatprep.subr.mxu0 0.0
    %433 = vmatpush1.msra.mxu0 %v249
    %434 = vmatprep.subr.mxu0 0.0
    %435 = vmatpush1.msra.mxu0 %v250
    %436 = vmatprep.subr.mxu0 0.0
    %437 = vmatpush1.msra.mxu0 %v251
    %438 = vmatprep.subr.mxu0 0.0
    %439 = vmatpush1.msra.mxu0 %v252
    %440 = vmatprep.subr.mxu0 0.0
    %441 = vmatpush1.msra.mxu0 0.0
    %442 = vmatprep.subr.mxu0 0.0
    %443 = vmatpush1.msra.mxu0 0.0
    %444 = vmatprep.subr.mxu0 0.0
    %445 = vmatpush1.msra.mxu0 0.0
    %446 = vmatprep.subr.mxu0 0.0
    %447 = vmatpush1.msra.mxu0 0.0
    %448 = vmatprep.subr.mxu0 0.0
    %449 = vmatpush1.msra.mxu0 0.0
    %450 = vmatprep.subr.mxu0 0.0
    %451 = vmatpush1.msra.mxu0 0.0
    %452 = vmatprep.subr.mxu0 0.0
    %453 = vmatpush1.msra.mxu0 0.0
    %454 = vmatprep.subr.mxu0 0.0
    %455 = vmatpush1.msra.mxu0 0.0
    %456 = vmatprep.subr.mxu0 0.0
    %457 = vmatpush1.msra.mxu0 0.0
    %458 = vmatprep.subr.mxu0 0.0
    %459 = vmatpush1.msra.mxu0 0.0
    %460 = vmatprep.subr.mxu0 0.0
    %461 = vmatpush1.msra.mxu0 0.0
    %462 = vmatprep.subr.mxu0 0.0
    %463 = vmatpush1.msra.mxu0 0.0
    %464 = vmatprep.subr.mxu0 0.0
    %465 = vmatpush1.msra.mxu0 0.0
    %466 = vmatprep.subr.mxu0 0.0
    %467 = vmatpush1.msra.mxu0 0.0
    %468 = vmatprep.subr.mxu0 0.0
    %469 = vmatpush1.msra.mxu0 0.0
    %470 = vmatprep.subr.mxu0 0.0
    %471 = vmatpush1.msra.mxu0 0.0
    %472 = vmatprep.mubr.f32.mxu0 0.0
    %473 = vmatmul.mubr.f32.gmra.mrb[0].mxu0 %v403
    %v474 = vpop.f32.mrb[0].mxu0
    %v475 = vadd.f32 0.0, %v474
    %v476 = vpop.f32.mrb[0].mxu0
    %477 = vdwg.mxu0
    %v478 = vadd.f32 %v407, %v475
    %v479 = vtanh.pop %v478
    %s480 = scalar_lea.vmem [#allocation7], 16
    %481 = vst [vmem:[%s480] sm:$0xff] %v479
    %s482 = scalar_lea.vmem [#allocation2], 24
    %v483 = vld [vmem:[%s482] sm:$0xff]
    %484 = vmatprep.subr.mxu0 0.0
    %485 = vmatpush1.msra.mxu0 %v237
    %486 = vmatprep.subr.mxu0 0.0
    %487 = vmatpush1.msra.mxu0 %v238
    %488 = vmatprep.subr.mxu0 0.0
    %489 = vmatpush1.msra.mxu0 %v239
    %490 = vmatprep.subr.mxu0 0.0
    %491 = vmatpush1.msra.mxu0 %v240
    %492 = vmatprep.subr.mxu0 0.0
    %493 = vmatpush1.msra.mxu0 %v241
    %494 = vmatprep.subr.mxu0 0.0
    %495 = vmatpush1.msra.mxu0 %v242
    %496 = vmatprep.subr.mxu0 0.0
    %497 = vmatpush1.msra.mxu0 %v243
    %498 = vmatprep.subr.mxu0 0.0
    %499 = vmatpush1.msra.mxu0 %v244
    %500 = vmatprep.subr.mxu0 0.0
    %501 = vmatpush1.msra.mxu0 %v245
    %502 = vmatprep.subr.mxu0 0.0
    %503 = vmatpush1.msra.mxu0 %v246
    %504 = vmatprep.subr.mxu0 0.0
    %505 = vmatpush1.msra.mxu0 %v247
    %506 = vmatprep.subr.mxu0 0.0
    %507 = vmatpush1.msra.mxu0 %v248
    %508 = vmatprep.subr.mxu0 0.0
    %509 = vmatpush1.msra.mxu0 %v249
    %510 = vmatprep.subr.mxu0 0.0
    %511 = vmatpush1.msra.mxu0 %v250
    %512 = vmatprep.subr.mxu0 0.0
    %513 = vmatpush1.msra.mxu0 %v251
    %514 = vmatprep.subr.mxu0 0.0
    %515 = vmatpush1.msra.mxu0 %v252
    %516 = vmatprep.subr.mxu0 0.0
    %517 = vmatpush1.msra.mxu0 0.0
    %518 = vmatprep.subr.mxu0 0.0
    %519 = vmatpush1.msra.mxu0 0.0
    %520 = vmatprep.subr.mxu0 0.0
    %521 = vmatpush1.msra.mxu0 0.0
    %522 = vmatprep.subr.mxu0 0.0
    %523 = vmatpush1.msra.mxu0 0.0
    %524 = vmatprep.subr.mxu0 0.0
    %525 = vmatpush1.msra.mxu0 0.0
    %526 = vmatprep.subr.mxu0 0.0
    %527 = vmatpush1.msra.mxu0 0.0
    %528 = vmatprep.subr.mxu0 0.0
    %529 = vmatpush1.msra.mxu0 0.0
    %530 = vmatprep.subr.mxu0 0.0
    %531 = vmatpush1.msra.mxu0 0.0
    %532 = vmatprep.subr.mxu0 0.0
    %533 = vmatpush1.msra.mxu0 0.0
    %534 = vmatprep.subr.mxu0 0.0
    %535 = vmatpush1.msra.mxu0 0.0
    %536 = vmatprep.subr.mxu0 0.0
    %537 = vmatpush1.msra.mxu0 0.0
    %538 = vmatprep.subr.mxu0 0.0
    %539 = vmatpush1.msra.mxu0 0.0
    %540 = vmatprep.subr.mxu0 0.0
    %541 = vmatpush1.msra.mxu0 0.0
    %542 = vmatprep.subr.mxu0 0.0
    %543 = vmatpush1.msra.mxu0 0.0
    %544 = vmatprep.subr.mxu0 0.0
    %545 = vmatpush1.msra.mxu0 0.0
    %546 = vmatprep.subr.mxu0 0.0
    %547 = vmatpush1.msra.mxu0 0.0
    %548 = vmatprep.mubr.f32.mxu0 0.0
    %549 = vmatmul.mubr.f32.gmra.mrb[0].mxu0 %v479
    %v550 = vpop.f32.mrb[0].mxu0
    %v551 = vadd.f32 0.0, %v550
    %v552 = vpop.f32.mrb[0].mxu0
    %553 = vdwg.mxu0
    %v554 = vadd.f32 %v483, %v551
    %v555 = vtanh.pop %v554
    %s556 = scalar_lea.vmem [#allocation7], 24
    %557 = vst [vmem:[%s556] sm:$0xff] %v555
    %s558 = scalar_lea.vmem [#allocation2], 32
    %v559 = vld [vmem:[%s558] sm:$0xff]
    %560 = vmatprep.subr.mxu0 0.0
    %561 = vmatpush1.msra.mxu0 %v237
    %562 = vmatprep.subr.mxu0 0.0
    %563 = vmatpush1.msra.mxu0 %v238
    %564 = vmatprep.subr.mxu0 0.0
    %565 = vmatpush1.msra.mxu0 %v239
    %566 = vmatprep.subr.mxu0 0.0
    %567 = vmatpush1.msra.mxu0 %v240
    %568 = vmatprep.subr.mxu0 0.0
    %569 = vmatpush1.msra.mxu0 %v241
    %570 = vmatprep.subr.mxu0 0.0
    %571 = vmatpush1.msra.mxu0 %v242
    %572 = vmatprep.subr.mxu0 0.0
    %573 = vmatpush1.msra.mxu0 %v243
    %574 = vmatprep.subr.mxu0 0.0
    %575 = vmatpush1.msra.mxu0 %v244
    %576 = vmatprep.subr.mxu0 0.0
    %577 = vmatpush1.msra.mxu0 %v245
    %578 = vmatprep.subr.mxu0 0.0
    %579 = vmatpush1.msra.mxu0 %v246
    %580 = vmatprep.subr.mxu0 0.0
    %581 = vmatpush1.msra.mxu0 %v247
    %582 = vmatprep.subr.mxu0 0.0
    %583 = vmatpush1.msra.mxu0 %v248
    %584 = vmatprep.subr.mxu0 0.0
    %585 = vmatpush1.msra.mxu0 %v249
    %586 = vmatprep.subr.mxu0 0.0
    %587 = vmatpush1.msra.mxu0 %v250
    %588 = vmatprep.subr.mxu0 0.0
    %589 = vmatpush1.msra.mxu0 %v251
    %590 = vmatprep.subr.mxu0 0.0
    %591 = vmatpush1.msra.mxu0 %v252
    %592 = vmatprep.subr.mxu0 0.0
    %593 = vmatpush1.msra.mxu0 0.0
    %594 = vmatprep.subr.mxu0 0.0
    %595 = vmatpush1.msra.mxu0 0.0
    %596 = vmatprep.subr.mxu0 0.0
    %597 = vmatpush1.msra.mxu0 0.0
    %598 = vmatprep.subr.mxu0 0.0
    %599 = vmatpush1.msra.mxu0 0.0
    %600 = vmatprep.subr.mxu0 0.0
    %601 = vmatpush1.msra.mxu0 0.0
    %602 = vmatprep.subr.mxu0 0.0
    %603 = vmatpush1.msra.mxu0 0.0
    %604 = vmatprep.subr.mxu0 0.0
    %605 = vmatpush1.msra.mxu0 0.0
    %606 = vmatprep.subr.mxu0 0.0
    %607 = vmatpush1.msra.mxu0 0.0
    %608 = vmatprep.subr.mxu0 0.0
    %609 = vmatpush1.msra.mxu0 0.0
    %610 = vmatprep.subr.mxu0 0.0
    %611 = vmatpush1.msra.mxu0 0.0
    %612 = vmatprep.subr.mxu0 0.0
    %613 = vmatpush1.msra.mxu0 0.0
    %614 = vmatprep.subr.mxu0 0.0
    %615 = vmatpush1.msra.mxu0 0.0
    %616 = vmatprep.subr.mxu0 0.0
    %617 = vmatpush1.msra.mxu0 0.0
    %618 = vmatprep.subr.mxu0 0.0
    %619 = vmatpush1.msra.mxu0 0.0
    %620 = vmatprep.subr.mxu0 0.0
    %621 = vmatpush1.msra.mxu0 0.0
    %622 = vmatprep.subr.mxu0 0.0
    %623 = vmatpush1.msra.mxu0 0.0
    %624 = vmatprep.mubr.f32.mxu0 0.0
    %625 = vmatmul.mubr.f32.gmra.mrb[0].mxu0 %v555
    %v626 = vpop.f32.mrb[0].mxu0
    %v627 = vadd.f32 0.0, %v626
    %v628 = vpop.f32.mrb[0].mxu0
    %629 = vdwg.mxu0
    %v630 = vadd.f32 %v559, %v627
    %v631 = vtanh.pop %v630
    %s632 = scalar_lea.vmem [#allocation7], 32
    %633 = vst [vmem:[%s632] sm:$0xff] %v631
    %s634 = scalar_lea.vmem [#allocation2], 40
    %v635 = vld [vmem:[%s634] sm:$0xff]
    %636 = vmatprep.subr.mxu0 0.0
    %637 = vmatpush1.msra.mxu0 %v237
    %638 = vmatprep.subr.mxu0 0.0
    %639 = vmatpush1.msra.mxu0 %v238
    %640 = vmatprep.subr.mxu0 0.0
    %641 = vmatpush1.msra.mxu0 %v239
    %642 = vmatprep.subr.mxu0 0.0
    %643 = vmatpush1.msra.mxu0 %v240
    %644 = vmatprep.subr.mxu0 0.0
    %645 = vmatpush1.msra.mxu0 %v241
    %646 = vmatprep.subr.mxu0 0.0
    %647 = vmatpush1.msra.mxu0 %v242
    %648 = vmatprep.subr.mxu0 0.0
    %649 = vmatpush1.msra.mxu0 %v243
    %650 = vmatprep.subr.mxu0 0.0
    %651 = vmatpush1.msra.mxu0 %v244
    %652 = vmatprep.subr.mxu0 0.0
    %653 = vmatpush1.msra.mxu0 %v245
    %654 = vmatprep.subr.mxu0 0.0
    %655 = vmatpush1.msra.mxu0 %v246
    %656 = vmatprep.subr.mxu0 0.0
    %657 = vmatpush1.msra.mxu0 %v247
    %658 = vmatprep.subr.mxu0 0.0
    %659 = vmatpush1.msra.mxu0 %v248
    %660 = vmatprep.subr.mxu0 0.0
    %661 = vmatpush1.msra.mxu0 %v249
    %662 = vmatprep.subr.mxu0 0.0
    %663 = vmatpush1.msra.mxu0 %v250
    %664 = vmatprep.subr.mxu0 0.0
    %665 = vmatpush1.msra.mxu0 %v251
    %666 = vmatprep.subr.mxu0 0.0
    %667 = vmatpush1.msra.mxu0 %v252
    %668 = vmatprep.subr.mxu0 0.0
    %669 = vmatpush1.msra.mxu0 0.0
    %670 = vmatprep.subr.mxu0 0.0
    %671 = vmatpush1.msra.mxu0 0.0
    %672 = vmatprep.subr.mxu0 0.0
    %673 = vmatpush1.msra.mxu0 0.0
    %674 = vmatprep.subr.mxu0 0.0
    %675 = vmatpush1.msra.mxu0 0.0
    %676 = vmatprep.subr.mxu0 0.0
    %677 = vmatpush1.msra.mxu0 0.0
    %678 = vmatprep.subr.mxu0 0.0
    %679 = vmatpush1.msra.mxu0 0.0
    %680 = vmatprep.subr.mxu0 0.0
    %681 = vmatpush1.msra.mxu0 0.0
    %682 = vmatprep.subr.mxu0 0.0
    %683 = vmatpush1.msra.mxu0 0.0
    %684 = vmatprep.subr.mxu0 0.0
    %685 = vmatpush1.msra.mxu0 0.0
    %686 = vmatprep.subr.mxu0 0.0
    %687 = vmatpush1.msra.mxu0 0.0
    %688 = vmatprep.subr.mxu0 0.0
    %689 = vmatpush1.msra.mxu0 0.0
    %690 = vmatprep.subr.mxu0 0.0
    %691 = vmatpush1.msra.mxu0 0.0
    %692 = vmatprep.subr.mxu0 0.0
    %693 = vmatpush1.msra.mxu0 0.0
    %694 = vmatprep.subr.mxu0 0.0
    %695 = vmatpush1.msra.mxu0 0.0
    %696 = vmatprep.subr.mxu0 0.0
    %697 = vmatpush1.msra.mxu0 0.0
    %698 = vmatprep.subr.mxu0 0.0
    %699 = vmatpush1.msra.mxu0 0.0
    %700 = vmatprep.mubr.f32.mxu0 0.0
    %701 = vmatmul.mubr.f32.gmra.mrb[0].mxu0 %v631
    %v702 = vpop.f32.mrb[0].mxu0
    %v703 = vadd.f32 0.0, %v702
    %v704 = vpop.f32.mrb[0].mxu0
    %705 = vdwg.mxu0
    %v706 = vadd.f32 %v635, %v703
    %v707 = vtanh.pop %v706
    %s708 = scalar_lea.vmem [#allocation7], 40
    %709 = vst [vmem:[%s708] sm:$0xff] %v707
    %s710 = scalar_lea.vmem [#allocation2], 48
    %v711 = vld [vmem:[%s710] sm:$0xff]
    %712 = vmatprep.subr.mxu0 0.0
    %713 = vmatpush1.msra.mxu0 %v237
    %714 = vmatprep.subr.mxu0 0.0
    %715 = vmatpush1.msra.mxu0 %v238
    %716 = vmatprep.subr.mxu0 0.0
    %717 = vmatpush1.msra.mxu0 %v239
    %718 = vmatprep.subr.mxu0 0.0
    %719 = vmatpush1.msra.mxu0 %v240
    %720 = vmatprep.subr.mxu0 0.0
    %721 = vmatpush1.msra.mxu0 %v241
    %722 = vmatprep.subr.mxu0 0.0
    %723 = vmatpush1.msra.mxu0 %v242
    %724 = vmatprep.subr.mxu0 0.0
    %725 = vmatpush1.msra.mxu0 %v243
    %726 = vmatprep.subr.mxu0 0.0
    %727 = vmatpush1.msra.mxu0 %v244
    %728 = vmatprep.subr.mxu0 0.0
    %729 = vmatpush1.msra.mxu0 %v245
    %730 = vmatprep.subr.mxu0 0.0
    %731 = vmatpush1.msra.mxu0 %v246
    %732 = vmatprep.subr.mxu0 0.0
    %733 = vmatpush1.msra.mxu0 %v247
    %734 = vmatprep.subr.mxu0 0.0
    %735 = vmatpush1.msra.mxu0 %v248
    %736 = vmatprep.subr.mxu0 0.0
    %737 = vmatpush1.msra.mxu0 %v249
    %738 = vmatprep.subr.mxu0 0.0
    %739 = vmatpush1.msra.mxu0 %v250
    %740 = vmatprep.subr.mxu0 0.0
    %741 = vmatpush1.msra.mxu0 %v251
    %742 = vmatprep.subr.mxu0 0.0
    %743 = vmatpush1.msra.mxu0 %v252
    %744 = vmatprep.subr.mxu0 0.0
    %745 = vmatpush1.msra.mxu0 0.0
    %746 = vmatprep.subr.mxu0 0.0
    %747 = vmatpush1.msra.mxu0 0.0
    %748 = vmatprep.subr.mxu0 0.0
    %749 = vmatpush1.msra.mxu0 0.0
    %750 = vmatprep.subr.mxu0 0.0
    %751 = vmatpush1.msra.mxu0 0.0
    %752 = vmatprep.subr.mxu0 0.0
    %753 = vmatpush1.msra.mxu0 0.0
    %754 = vmatprep.subr.mxu0 0.0
    %755 = vmatpush1.msra.mxu0 0.0
    %756 = vmatprep.subr.mxu0 0.0
    %757 = vmatpush1.msra.mxu0 0.0
    %758 = vmatprep.subr.mxu0 0.0
    %759 = vmatpush1.msra.mxu0 0.0
    %760 = vmatprep.subr.mxu0 0.0
    %761 = vmatpush1.msra.mxu0 0.0
    %762 = vmatprep.subr.mxu0 0.0
    %763 = vmatpush1.msra.mxu0 0.0
    %764 = vmatprep.subr.mxu0 0.0
    %765 = vmatpush1.msra.mxu0 0.0
    %766 = vmatprep.subr.mxu0 0.0
    %767 = vmatpush1.msra.mxu0 0.0
    %768 = vmatprep.subr.mxu0 0.0
    %769 = vmatpush1.msra.mxu0 0.0
    %770 = vmatprep.subr.mxu0 0.0
    %771 = vmatpush1.msra.mxu0 0.0
    %772 = vmatprep.subr.mxu0 0.0
    %773 = vmatpush1.msra.mxu0 0.0
    %774 = vmatprep.subr.mxu0 0.0
    %775 = vmatpush1.msra.mxu0 0.0
    %776 = vmatprep.mubr.f32.mxu0 0.0
    %777 = vmatmul.mubr.f32.gmra.mrb[0].mxu0 %v707
    %v778 = vpop.f32.mrb[0].mxu0
    %v779 = vadd.f32 0.0, %v778
    %v780 = vpop.f32.mrb[0].mxu0
    %781 = vdwg.mxu0
    %v782 = vadd.f32 %v711, %v779
    %v783 = vtanh.pop %v782
    %s784 = scalar_lea.vmem [#allocation7], 48
    %785 = vst [vmem:[%s784] sm:$0xff] %v783
    %s786 = scalar_lea.vmem [#allocation2], 56
    %v787 = vld [vmem:[%s786] sm:$0xff]
    %788 = vmatprep.subr.mxu0 0.0
    %789 = vmatpush1.msra.mxu0 %v237
    %790 = vmatprep.subr.mxu0 0.0
    %791 = vmatpush1.msra.mxu0 %v238
    %792 = vmatprep.subr.mxu0 0.0
    %793 = vmatpush1.msra.mxu0 %v239
    %794 = vmatprep.subr.mxu0 0.0
    %795 = vmatpush1.msra.mxu0 %v240
    %796 = vmatprep.subr.mxu0 0.0
    %797 = vmatpush1.msra.mxu0 %v241
    %798 = vmatprep.subr.mxu0 0.0
    %799 = vmatpush1.msra.mxu0 %v242
    %800 = vmatprep.subr.mxu0 0.0
    %801 = vmatpush1.msra.mxu0 %v243
    %802 = vmatprep.subr.mxu0 0.0
    %803 = vmatpush1.msra.mxu0 %v244
    %804 = vmatprep.subr.mxu0 0.0
    %805 = vmatpush1.msra.mxu0 %v245
    %806 = vmatprep.subr.mxu0 0.0
    %807 = vmatpush1.msra.mxu0 %v246
    %808 = vmatprep.subr.mxu0 0.0
    %809 = vmatpush1.msra.mxu0 %v247
    %810 = vmatprep.subr.mxu0 0.0
    %811 = vmatpush1.msra.mxu0 %v248
    %812 = vmatprep.subr.mxu0 0.0
    %813 = vmatpush1.msra.mxu0 %v249
    %814 = vmatprep.subr.mxu0 0.0
    %815 = vmatpush1.msra.mxu0 %v250
    %816 = vmatprep.subr.mxu0 0.0
    %817 = vmatpush1.msra.mxu0 %v251
    %818 = vmatprep.subr.mxu0 0.0
    %819 = vmatpush1.msra.mxu0 %v252
    %820 = vmatprep.subr.mxu0 0.0
    %821 = vmatpush1.msra.mxu0 0.0
    %822 = vmatprep.subr.mxu0 0.0
    %823 = vmatpush1.msra.mxu0 0.0
    %824 = vmatprep.subr.mxu0 0.0
    %825 = vmatpush1.msra.mxu0 0.0
    %826 = vmatprep.subr.mxu0 0.0
    %827 = vmatpush1.msra.mxu0 0.0
    %828 = vmatprep.subr.mxu0 0.0
    %829 = vmatpush1.msra.mxu0 0.0
    %830 = vmatprep.subr.mxu0 0.0
    %831 = vmatpush1.msra.mxu0 0.0
    %832 = vmatprep.subr.mxu0 0.0
    %833 = vmatpush1.msra.mxu0 0.0
    %834 = vmatprep.subr.mxu0 0.0
    %835 = vmatpush1.msra.mxu0 0.0
    %836 = vmatprep.subr.mxu0 0.0
    %837 = vmatpush1.msra.mxu0 0.0
    %838 = vmatprep.subr.mxu0 0.0
    %839 = vmatpush1.msra.mxu0 0.0
    %840 = vmatprep.subr.mxu0 0.0
    %841 = vmatpush1.msra.mxu0 0.0
    %842 = vmatprep.subr.mxu0 0.0
    %843 = vmatpush1.msra.mxu0 0.0
    %844 = vmatprep.subr.mxu0 0.0
    %845 = vmatpush1.msra.mxu0 0.0
    %846 = vmatprep.subr.mxu0 0.0
    %847 = vmatpush1.msra.mxu0 0.0
    %848 = vmatprep.subr.mxu0 0.0
    %849 = vmatpush1.msra.mxu0 0.0
    %850 = vmatprep.subr.mxu0 0.0
    %851 = vmatpush1.msra.mxu0 0.0
    %852 = vmatprep.mubr.f32.mxu0 0.0
    %853 = vmatmul.mubr.f32.gmra.mrb[0].mxu0 %v783
    %v854 = vpop.f32.mrb[0].mxu0
    %v855 = vadd.f32 0.0, %v854
    %v856 = vpop.f32.mrb[0].mxu0
    %857 = vdwg.mxu0
    %v858 = vadd.f32 %v787, %v855
    %v859 = vtanh.pop %v858
    %s860 = scalar_lea.vmem [#allocation7], 56
    %861 = vst [vmem:[%s860] sm:$0xff] %v859
    %862 = vst [vmem:[%s254] sm:$0xff] %v859
    // Predicated region
    $region22: #{tpu_custom_call.1} parent=1 // pred_check
      _
    $region23: #{tpu_custom_call.1} parent=1 // pred_check_branch
      %864 = sbr.rel (0) target = $region25
    $region24: #{tpu_custom_call.1} parent=1 // pred_region
      %s865 = ssub.s32 1, 0
      %s866 = smul.u32 0, %s865
      %s867 = ssub.s32 0, 0
      %s868 = smul.u32 %s867, 0
      %s869 = sadd.s32 %s866, %s868
      %s870 = smul.u32 8, %s869
      %s872 = ssub.s32 1024, 1024
      %873 = vsyncadd [#allocation6], %s872
      %s874 = smul.addr %s870, 128
      %s875 = scalar_lea.hbm %s3, %s874
      %s876 = sshll.u32 [#allocation7], 4
      %s877 = int_to_ptr.vmem [resolvable:$true] %s876
      %882 = dma.vmem_to_hbm [thread:$0]  %s877, 1024, %s875, [#allocation6], 128, 128, 8
    $region25: #{tpu_custom_call.1} parent=1 // pred_fallthru
      _
    // Predicated region
    $region26: #{tpu_custom_call.1} parent=1 // pred_check
      _
    $region27: #{tpu_custom_call.1} parent=1 // pred_check_branch
      %884 = sbr.rel (0) target = $region29
    $region28: #{tpu_custom_call.1} parent=1 // pred_region
      %885 = dma.done [#allocation6], 1024
    $region29: #{tpu_custom_call.1} parent=1 // pred_fallthru
      _
    %886 = vsyncpa [#allocation5], 1
    %887 = vsyncpa [#allocation6], 1

</llo_original>
